<compile_context>
chip_gen: v5e
topology: v5e:2x2
jax: 0.10.0
libtpu: 0.0.40
codegen_flags: <defaults>
</compile_context>

<pallas_src>
import functools

import jax
import jax.numpy as jnp
from jax import lax
from jax.experimental import pallas as pl
from jax.experimental.pallas import tpu as pltpu


# ----------------------------------------------------------------------------
# Pallas kernel: fused BasicBlock forward for `nb` batch elements per step
# ----------------------------------------------------------------------------
def _basic_block_kernel(x_ref, w0_ref, b0_ref, w1_ref, b1_ref, w2_ref, b2_ref,
                        o_ref, *, h, w, ksize, pad, nb):
    """x_ref: (nb, C, H*W); w0: (P, C); w1: (P, k*P); w2: (C, P); b*: (., 1)."""
    hw = h * w
    w0 = w0_ref[...]
    w1 = w1_ref[...]
    w2 = w2_ref[...]
    b0 = b0_ref[...]
    b1 = b1_ref[...]
    b2 = b2_ref[...]

    # Row-boundary masks for each off-centre tap (valid rows of tap offset d are
    # those with 0 <= r + d < H, i.e. lane index in [max(0,-d)*W, min(H, H-d)*W)).
    # Hoisted out of the batch loop (JAX does not CSE broadcasts).
    lane = lax.broadcasted_iota(jnp.int32, (w0.shape[0], hw), 1)
    masks = {}
    for t in range(ksize):
        d = t - pad
        if d != 0:
            lo = max(0, -d) * w
            hi = min(h, h - d) * w
            masks[d] = (lane >= lo) & (lane < hi)

    for b in range(nb):  # static unroll; nb kept small (default 1)
        x = x_ref[b].astype(jnp.float32)                          # (C, HW)

        # conv0 (1x1) + bn0 (folded) + ReLU
        h0 = jnp.maximum(
            jnp.dot(w0, x, preferred_element_type=jnp.float32) + b0, 0.0)

        # conv1 ((k,1), pad over H) + bn1 (folded) + ReLU; dropout = identity.
        # Single stacked-tap matmul: taps are lane rotations by d*W (XLU) with
        # boundary rows zeroed, stacked on sublanes into a (k*P, HW) RHS.
        taps = []
        for t in range(ksize):
            d = t - pad
            if d == 0:
                taps.append(h0)
            else:
                rolled = pltpu.roll(h0, shift=(-d * w) % hw, axis=1)
                taps.append(jnp.where(masks[d], rolled, 0.0))
        rhs = jnp.concatenate(taps, axis=0)                       # (k*P, HW)
        h1 = jnp.maximum(
            jnp.dot(w1, rhs, preferred_element_type=jnp.float32) + b1, 0.0)

        # conv2 (1x1) + bn2 (folded), residual add, ReLU (f32 epilogue).
        h2 = jnp.dot(w2, h1, preferred_element_type=jnp.float32) + b2
        o_ref[b] = jnp.maximum(h2 + x, 0.0).astype(o_ref.dtype)


# ----------------------------------------------------------------------------
# Wrapper
# ----------------------------------------------------------------------------
def basic_block_forward(x, folded, *, ksize, pad, batch_block=1):
    n, c, h, w = x.shape
    planes = folded["w0"].shape[0]
    assert folded["w2"].shape[0] == c
    assert 2 * pad == ksize - 1, "residual add needs a shape-preserving conv1"
    assert n % batch_block == 0
    hw = h * w
    xf = x.reshape(n, c, hw)

    kernel = functools.partial(_basic_block_kernel, h=h, w=w, ksize=ksize,
                               pad=pad, nb=batch_block)
    const2 = lambda i: (0, 0)
    out = pl.pallas_call(
        kernel,
        out_shape=jax.ShapeDtypeStruct((n, c, hw), x.dtype),
        grid=(n // batch_block,),
        in_specs=[
            pl.BlockSpec((batch_block, c, hw), lambda i: (i, 0, 0)),
            pl.BlockSpec((planes, c), const2),
            pl.BlockSpec((planes, 1), const2),
            pl.BlockSpec((planes, ksize * planes), const2),
            pl.BlockSpec((planes, 1), const2),
            pl.BlockSpec((c, planes), const2),
            pl.BlockSpec((c, 1), const2),
        ],
        out_specs=pl.BlockSpec((batch_block, c, hw), lambda i: (i, 0, 0)),
        # Residual output reuses the input HBM buffer (disjoint per-step blocks).
        input_output_aliases={0: 0},
        compiler_params=pltpu.CompilerParams(dimension_semantics=("parallel",)),
    )(xf, folded["w0"], folded["b0"], folded["w1"], folded["b1"],
      folded["w2"], folded["b2"])
    return out.reshape(n, c, h, w)


# ----------------------------------------------------------------------------
# Deterministic parameter init (raw conv + BN) and eval-mode folding
# ----------------------------------------------------------------------------
def init_raw_params(key, inplanes, planes, ksize, eps=1e-5):
    ks = jax.random.split(key, 12)
    raw = {
        "w0": 0.2 * jax.random.normal(ks[0], (planes, inplanes, 1, 1), jnp.float32),
        "bias0": 0.1 * jax.random.normal(ks[1], (planes,), jnp.float32),
        "w1": 0.2 * jax.random.normal(ks[2], (planes, planes, ksize, 1), jnp.float32),
        "bias1": 0.1 * jax.random.normal(ks[3], (planes,), jnp.float32),
        "w2": 0.2 * jax.random.normal(ks[4], (inplanes, planes, 1, 1), jnp.float32),
        "bias2": 0.1 * jax.random.normal(ks[5], (inplanes,), jnp.float32),
        "eps": eps,
    }
    for i, ch in zip(range(3), (planes, planes, inplanes)):
        kg, kb, km, kv = jax.random.split(ks[6 + i], 4)
        raw[f"bn{i}"] = dict(
            gamma=1.0 + 0.1 * jax.random.normal(kg, (ch,), jnp.float32),
            beta=0.1 * jax.random.normal(kb, (ch,), jnp.float32),
            mean=0.1 * jax.random.normal(km, (ch,), jnp.float32),
            var=1.0 + 0.1 * jax.random.uniform(kv, (ch,), jnp.float32),
        )
    return raw


def fold_params(raw):
    """Fold conv bias + eval-mode BN into per-layer (weight, shift)."""
    eps = raw["eps"]

    def fold(wname, bname, bn):
        wgt = raw[wname][:, :, :, 0]                       # (Co, Ci, kh)
        s = bn["gamma"] / jnp.sqrt(bn["var"] + eps)
        wf = wgt * s[:, None, None]
        bf = s * (raw[bname] - bn["mean"]) + bn["beta"]
        return wf, bf

    w0, b0 = fold("w0", "bias0", raw["bn0"])               # (P, C, 1)
    w1, b1 = fold("w1", "bias1", raw["bn1"])               # (P, P, k)
    w2, b2 = fold("w2", "bias2", raw["bn2"])               # (C, P, 1)
    k = w1.shape[2]
    w1s = jnp.concatenate([w1[:, :, t] for t in range(k)], axis=1)  # (P, k*P)
    return {
        "w0": w0[:, :, 0], "b0": b0[:, None],
        "w1": w1s, "b1": b1[:, None],
        "w2": w2[:, :, 0], "b2": b2[:, None],
    }


# ----------------------------------------------------------------------------
# Pure-JAX reference (unfolded conv + BN) for correctness check
# ----------------------------------------------------------------------------
def ref_forward(x, raw, *, pad):
    eps = raw["eps"]

    def bn(hval, p):
        g = p["gamma"].reshape(1, -1, 1, 1)
        b = p["beta"].reshape(1, -1, 1, 1)
        m = p["mean"].reshape(1, -1, 1, 1)
        v = p["var"].reshape(1, -1, 1, 1)
        return (hval - m) * (g / jnp.sqrt(v + eps)) + b

    def conv(hval, wgt, ph):
        return lax.conv_general_dilated(
            hval, wgt, (1, 1), [(ph, ph), (0, 0)],
            dimension_numbers=("NCHW", "OIHW", "NCHW"),
            precision=lax.Precision.HIGHEST)

    h = conv(x, raw["w0"], 0) + raw["bias0"].reshape(1, -1, 1, 1)
    h = jnp.maximum(bn(h, raw["bn0"]), 0.0)
    h = conv(h, raw["w1"], pad) + raw["bias1"].reshape(1, -1, 1, 1)
    h = jnp.maximum(bn(h, raw["bn1"]), 0.0)
    # dropout: eval-mode identity
    h = conv(h, raw["w2"], 0) + raw["bias2"].reshape(1, -1, 1, 1)
    h = bn(h, raw["bn2"])
    return jnp.maximum(h + x, 0.0)


if __name__ == "__main__":
    N, INPLANES, PLANES, H, W = 2, 8, 8, 16, 16
    KSIZE, PAD = 3, 1

    key = jax.random.PRNGKey(0)
    key, kx = jax.random.split(key)
    x = jax.random.normal(kx, (N, INPLANES, H, W), jnp.float32)
    raw = init_raw_params(key, INPLANES, PLANES, KSIZE)
    folded = fold_params(raw)

    # Reference first (keeps the original x untouched by any aliasing concerns).
    ref = jax.block_until_ready(ref_forward(x, raw, pad=PAD))

    out = basic_block_forward(x, folded, ksize=KSIZE, pad=PAD)
    out = jax.block_until_ready(out)

    assert out.shape == ref.shape, (out.shape, ref.shape)
    max_err = float(jnp.max(jnp.abs(out - ref)))
    if not bool(jnp.allclose(out, ref, rtol=2e-2, atol=2e-2)):
        raise AssertionError(f"Pallas/reference mismatch, max abs err = {max_err}")

    print("KERNEL_OK")
</pallas_src>

<mosaic_0001>
module attributes {stable_mosaic.version = 11 : i64} {
  func.func @_basic_block_kernel(%arg0: i32, %arg1: memref<1x8x256xf32, #tpu.memory_space<vmem>>, %arg2: memref<8x8xf32, #tpu.memory_space<vmem>>, %arg3: memref<8x1xf32, #tpu.memory_space<vmem>>, %arg4: memref<8x24xf32, #tpu.memory_space<vmem>>, %arg5: memref<8x1xf32, #tpu.memory_space<vmem>>, %arg6: memref<8x8xf32, #tpu.memory_space<vmem>>, %arg7: memref<8x1xf32, #tpu.memory_space<vmem>>, %arg8: memref<1x8x256xf32, #tpu.memory_space<vmem>>) attributes {dimension_semantics = [#tpu.dimension_semantics<parallel>], iteration_bounds = array<i64: 2>, scalar_prefetch = 0 : i64, scratch_operands = 0 : i64, tpu.core_type = #tpu.core_type<tc>, window_params = [{transform_indices = @transform_0, window_bounds = array<i64: 1, 8, 256>}, {pipeline_mode = #tpu.pipeline_mode<synchronous>, transform_indices = @transform_1, window_bounds = array<i64: 8, 8>}, {pipeline_mode = #tpu.pipeline_mode<synchronous>, transform_indices = @transform_2, window_bounds = array<i64: 8, 1>}, {pipeline_mode = #tpu.pipeline_mode<synchronous>, transform_indices = @transform_3, window_bounds = array<i64: 8, 24>}, {pipeline_mode = #tpu.pipeline_mode<synchronous>, transform_indices = @transform_4, window_bounds = array<i64: 8, 1>}, {pipeline_mode = #tpu.pipeline_mode<synchronous>, transform_indices = @transform_5, window_bounds = array<i64: 8, 8>}, {pipeline_mode = #tpu.pipeline_mode<synchronous>, transform_indices = @transform_6, window_bounds = array<i64: 8, 1>}, {transform_indices = @transform_7, window_bounds = array<i64: 1, 8, 256>}]} {
    %c0 = arith.constant 0 : index
    %c0_0 = arith.constant 0 : index
    %0 = vector.load %arg2[%c0, %c0_0] : memref<8x8xf32, #tpu.memory_space<vmem>>, vector<8x8xf32>
    %c0_1 = arith.constant 0 : index
    %c0_2 = arith.constant 0 : index
    %1 = vector.load %arg4[%c0_1, %c0_2] : memref<8x24xf32, #tpu.memory_space<vmem>>, vector<8x24xf32>
    %c0_3 = arith.constant 0 : index
    %c0_4 = arith.constant 0 : index
    %2 = vector.load %arg6[%c0_3, %c0_4] : memref<8x8xf32, #tpu.memory_space<vmem>>, vector<8x8xf32>
    %c0_5 = arith.constant 0 : index
    %c0_6 = arith.constant 0 : index
    %3 = vector.load %arg3[%c0_5, %c0_6] : memref<8x1xf32, #tpu.memory_space<vmem>>, vector<8x1xf32>
    %c0_7 = arith.constant 0 : index
    %c0_8 = arith.constant 0 : index
    %4 = vector.load %arg5[%c0_7, %c0_8] : memref<8x1xf32, #tpu.memory_space<vmem>>, vector<8x1xf32>
    %c0_9 = arith.constant 0 : index
    %c0_10 = arith.constant 0 : index
    %5 = vector.load %arg7[%c0_9, %c0_10] : memref<8x1xf32, #tpu.memory_space<vmem>>, vector<8x1xf32>
    %6 = tpu.iota {dimensions = array<i32: 1>} : vector<8x256xi32>
    %c16_i32 = arith.constant 16 : i32
    %7 = vector.broadcast %c16_i32 : i32 to vector<8x256xi32>
    %8 = arith.cmpi sge, %6, %7 : vector<8x256xi32>
    %c256_i32 = arith.constant 256 : i32
    %9 = vector.broadcast %c256_i32 : i32 to vector<8x256xi32>
    %10 = arith.cmpi slt, %6, %9 : vector<8x256xi32>
    %11 = arith.andi %8, %10 : vector<8x256xi1>
    %c0_i32 = arith.constant 0 : i32
    %12 = vector.broadcast %c0_i32 : i32 to vector<8x256xi32>
    %13 = arith.cmpi sge, %6, %12 : vector<8x256xi32>
    %c240_i32 = arith.constant 240 : i32
    %14 = vector.broadcast %c240_i32 : i32 to vector<8x256xi32>
    %15 = arith.cmpi slt, %6, %14 : vector<8x256xi32>
    %16 = arith.andi %13, %15 : vector<8x256xi1>
    %c0_11 = arith.constant 0 : index
    %c0_12 = arith.constant 0 : index
    %c0_13 = arith.constant 0 : index
    %17 = vector.load %arg1[%c0_11, %c0_12, %c0_13] : memref<1x8x256xf32, #tpu.memory_space<vmem>>, vector<1x8x256xf32>
    %18 = vector.shape_cast %17 : vector<1x8x256xf32> to vector<8x256xf32>
    %cst = arith.constant dense<0.000000e+00> : vector<8x256xf32>
    %19 = tpu.matmul %0, %18, %cst {dimension_numbers = #tpu.dot_dimension_numbers<[1], [0], [0], [1], [0, 0, 1, 1], [], []>} : vector<8x8xf32>, vector<8x256xf32>, vector<8x256xf32> -> vector<8x256xf32>
    %20 = vector.broadcast %3 : vector<8x1xf32> to vector<8x256xf32>
    %21 = arith.addf %19, %20 : vector<8x256xf32>
    %cst_14 = arith.constant 0.000000e+00 : f32
    %22 = vector.broadcast %cst_14 : f32 to vector<8x256xf32>
    %23 = arith.maximumf %21, %22 : vector<8x256xf32>
    %c16_i32_15 = arith.constant 16 : i32
    %24 = tpu.dynamic_rotate %23 by %c16_i32_15 dim 1 : vector<8x256xf32>, i32 -> vector<8x256xf32>
    %cst_16 = arith.constant 0.000000e+00 : f32
    %25 = vector.broadcast %cst_16 : f32 to vector<8x256xf32>
    %26 = arith.select %11, %24, %25 : vector<8x256xi1>, vector<8x256xf32>
    %c240_i32_17 = arith.constant 240 : i32
    %27 = tpu.dynamic_rotate %23 by %c240_i32_17 dim 1 : vector<8x256xf32>, i32 -> vector<8x256xf32>
    %cst_18 = arith.constant 0.000000e+00 : f32
    %28 = vector.broadcast %cst_18 : f32 to vector<8x256xf32>
    %29 = arith.select %16, %27, %28 : vector<8x256xi1>, vector<8x256xf32>
    %30 = tpu.concatenate %26, %23, %29 in 0 : vector<8x256xf32>, vector<8x256xf32>, vector<8x256xf32> -> vector<24x256xf32>
    %cst_19 = arith.constant dense<0.000000e+00> : vector<8x256xf32>
    %31 = tpu.matmul %1, %30, %cst_19 {dimension_numbers = #tpu.dot_dimension_numbers<[1], [0], [0], [1], [0, 0, 1, 1], [], []>} : vector<8x24xf32>, vector<24x256xf32>, vector<8x256xf32> -> vector<8x256xf32>
    %32 = vector.broadcast %4 : vector<8x1xf32> to vector<8x256xf32>
    %33 = arith.addf %31, %32 : vector<8x256xf32>
    %cst_20 = arith.constant 0.000000e+00 : f32
    %34 = vector.broadcast %cst_20 : f32 to vector<8x256xf32>
    %35 = arith.maximumf %33, %34 : vector<8x256xf32>
    %cst_21 = arith.constant dense<0.000000e+00> : vector<8x256xf32>
    %36 = tpu.matmul %2, %35, %cst_21 {dimension_numbers = #tpu.dot_dimension_numbers<[1], [0], [0], [1], [0, 0, 1, 1], [], []>} : vector<8x8xf32>, vector<8x256xf32>, vector<8x256xf32> -> vector<8x256xf32>
    %37 = vector.broadcast %5 : vector<8x1xf32> to vector<8x256xf32>
    %38 = arith.addf %36, %37 : vector<8x256xf32>
    %39 = arith.addf %38, %18 : vector<8x256xf32>
    %cst_22 = arith.constant 0.000000e+00 : f32
    %40 = vector.broadcast %cst_22 : f32 to vector<8x256xf32>
    %41 = arith.maximumf %39, %40 : vector<8x256xf32>
    %c0_23 = arith.constant 0 : index
    %c0_24 = arith.constant 0 : index
    %c0_25 = arith.constant 0 : index
    %42 = vector.load %arg8[%c0_23, %c0_24, %c0_25] : memref<1x8x256xf32, #tpu.memory_space<vmem>>, vector<1x8x256xf32>
    %43 = vector.shape_cast %42 : vector<1x8x256xf32> to vector<8x256xf32>
    %44 = vector.shape_cast %41 : vector<8x256xf32> to vector<1x8x256xf32>
    tpu.vector_store %arg8[%c0_23, %c0_24, %c0_25], %44 {strides = array<i32>} : memref<1x8x256xf32, #tpu.memory_space<vmem>>, vector<1x8x256xf32>,
    return
  }
  func.func @transform_0(%arg0: i32) -> (i32, i32, i32) {
    %c0_i32 = arith.constant 0 : i32
    %c0_i32_0 = arith.constant 0 : i32
    %c0_i32_1 = arith.constant 0 : i32
    return %arg0, %c0_i32, %c0_i32_0 : i32, i32, i32
  }
  func.func @transform_1(%arg0: i32) -> (i32, i32) {
    %c0_i32 = arith.constant 0 : i32
    %c0_i32_0 = arith.constant 0 : i32
    %c0_i32_1 = arith.constant 0 : i32
    return %c0_i32, %c0_i32_0 : i32, i32
  }
  func.func @transform_2(%arg0: i32) -> (i32, i32) {
    %c0_i32 = arith.constant 0 : i32
    %c0_i32_0 = arith.constant 0 : i32
    %c0_i32_1 = arith.constant 0 : i32
    return %c0_i32, %c0_i32_0 : i32, i32
  }
  func.func @transform_3(%arg0: i32) -> (i32, i32) {
    %c0_i32 = arith.constant 0 : i32
    %c0_i32_0 = arith.constant 0 : i32
    %c0_i32_1 = arith.constant 0 : i32
    return %c0_i32, %c0_i32_0 : i32, i32
  }
  func.func @transform_4(%arg0: i32) -> (i32, i32) {
    %c0_i32 = arith.constant 0 : i32
    %c0_i32_0 = arith.constant 0 : i32
    %c0_i32_1 = arith.constant 0 : i32
    return %c0_i32, %c0_i32_0 : i32, i32
  }
  func.func @transform_5(%arg0: i32) -> (i32, i32) {
    %c0_i32 = arith.constant 0 : i32
    %c0_i32_0 = arith.constant 0 : i32
    %c0_i32_1 = arith.constant 0 : i32
    return %c0_i32, %c0_i32_0 : i32, i32
  }
  func.func @transform_6(%arg0: i32) -> (i32, i32) {
    %c0_i32 = arith.constant 0 : i32
    %c0_i32_0 = arith.constant 0 : i32
    %c0_i32_1 = arith.constant 0 : i32
    return %c0_i32, %c0_i32_0 : i32, i32
  }
  func.func @transform_7(%arg0: i32) -> (i32, i32, i32) {
    %c0_i32 = arith.constant 0 : i32
    %c0_i32_0 = arith.constant 0 : i32
    %c0_i32_1 = arith.constant 0 : i32
    return %arg0, %c0_i32, %c0_i32_0 : i32, i32, i32
  }
}

</mosaic_0001>

<llo_original>
// kernel: tpu_custom_call.1
$region0: #{tpu_custom_call.1}
  #allocation0 [shape = 'u32[]', space=smem, size = 0x4, offset = 0x4, fixed_abs, tag = 'smem constant byte address 0x4 - core index']
  #allocation1 [shape = 'u32[72,128]{1,0:T(1,128)}', space=vmem, size = 0x9000, scoped, tag = 'internal scratch']
  %s0 = inlined_call_operand.hbm [shape: f32[2,8,256], index: 0, kind: input, shape index: {}, may-alias: {0,7}]
  %s1 = inlined_call_operand.vmem [shape: f32[8,8], index: 1, kind: input, shape index: {}]
  %s2 = inlined_call_operand.vmem [shape: f32[8,1], index: 2, kind: input, shape index: {}]
  %s3 = inlined_call_operand.vmem [shape: f32[8,24], index: 3, kind: input, shape index: {}]
  %s4 = inlined_call_operand.vmem [shape: f32[8,1], index: 4, kind: input, shape index: {}]
  %s5 = inlined_call_operand.vmem [shape: f32[8,8], index: 5, kind: input, shape index: {}]
  %s6 = inlined_call_operand.vmem [shape: f32[8,1], index: 6, kind: input, shape index: {}]
  %s7 = inlined_call_operand.hbm [shape: f32[2,8,256], index: 7, kind: output, shape index: {}, may-alias: {0,7}]
  %s8 = sld [smem:[#allocation0]]
  $region65: #{tpu_custom_call.1} parent=0
    _
  %s10 = ssub.s32 1, %s8
  %s11 = scalar_select 0, %s10, %s8
  $region1: #{tpu_custom_call.1} parent=0
    #allocation2 [shape = 'u8[16384]{0}', space=vmem, size = 0x4000, scoped, tag = 'input window, operand 0']
    #allocation3 [shape = 's32[2]{0}', space=sflag, size = 0x8, scoped, tag = 'scoped memory for tpu_custom_call.1']
    #allocation4 [shape = 's32[2]{0}', space=sflag, size = 0x8, scoped, tag = 'scoped memory for tpu_custom_call.1']
    #allocation5 [shape = 'u8[16384]{0}', space=vmem, size = 0x4000, scoped, tag = 'output window, operand 0']
    %12 = vsyncpa [#allocation3], 0
    %s13 = scalar_lea.sflag [#allocation3], 1
    %14 = vsyncpa %s13, 0
    %15 = vsyncpa [#allocation4], 0
    %s16 = scalar_lea.sflag [#allocation4], 1
    %17 = vsyncpa %s16, 0
    loop: start=0, step=1, limit=4
    $region2: #{tpu_custom_call.1} parent=1 // loop_pre_header
      _
    $region3: #{tpu_custom_call.1} parent=1 // loop_header
      %s19 = sphi 0, %s23
      %p20 = scmp.ge.s32.totalorder %s19, 4
      %s29 = sphi 0, %s31
      %s32 = sphi 0, %s29
      %s33 = sphi 0, %s32
      %s49 = sphi 0, %s33
      %s53 = sphi 0, %s53
      %s55 = sphi 0, %s53
      %s56 = sphi 0, %s55
      %s70 = sphi 0, %s56
      %s74 = sphi 0, %s74
      %s76 = sphi 0, %s74
      %s77 = sphi 0, %s76
      %s91 = sphi 0, %s77
      %s95 = sphi 0, %s95
      %s97 = sphi 0, %s95
      %s98 = sphi 0, %s97
      %s112 = sphi 0, %s98
      %s116 = sphi 0, %s116
      %s118 = sphi 0, %s116
      %s119 = sphi 0, %s118
      %s133 = sphi 0, %s119
      %s137 = sphi 0, %s137
      %s139 = sphi 0, %s137
      %s140 = sphi 0, %s139
      %s154 = sphi 0, %s140
      %s158 = sphi 0, %s158
      %s160 = sphi 0, %s158
      %s161 = sphi 0, %s160
      %s175 = sphi 0, %s161
      %s181 = sphi 0, %s183
      %s184 = sphi 0, %s181
      %s185 = sphi 0, %s184
      %s201 = sphi 0, %s185
    $region4: #{tpu_custom_call.1} parent=1 // loop_header_branch
      %22 = sbr.rel (%p20) target = $region8
    $region5: #{tpu_custom_call.1} parent=1 // loop_body
      %s24 = ssub.s32 %s19, 1
      %s25 = ssub.s32 %s19, 2
      %s26 = sadd.s32 %s19, 1
      %s27 = ssub.s32 %s19, %s26
      %p28 = scmp.eq.s32.totalorder %s27, 0
      %s30 = sadd.s32 %s29, 1
      %s31 = scalar_select %p28, %s29, %s30
      %p34 = pneg %p28
      %p35 = scmp.eq.s32.totalorder %s19, 1
      %p36 = por %p34, %p35
      %p37 = scmp.ne.s32.totalorder %s29, %s32
      %p38 = scmp.eq.s32.totalorder %s19, 0
      %p39 = por %p37, %p38
      %p40 = scmp.ne.s32.totalorder %s29, %s32
      %p41 = scmp.eq.s32.totalorder %s24, 1
      %p42 = por %p40, %p41
      %p43 = scmp.ne.s32.totalorder %s32, %s33
      %p44 = scmp.eq.s32.totalorder %s24, 0
      %p45 = por %p43, %p44
      %p46 = scmp.ne.s32.totalorder %s32, %s33
      %p47 = scmp.eq.s32.totalorder %s25, 1
      %p48 = por %p46, %p47
      %p50 = scmp.ne.s32.totalorder %s33, %s49
      %p51 = scmp.eq.s32.totalorder %s25, 0
      %p52 = por %p50, %p51
      %s54 = sadd.s32 %s53, 1
      %p57 = scmp.eq.s32.totalorder %s19, 1
      %p58 = scmp.ne.s32.totalorder %s53, %s55
      %p59 = scmp.eq.s32.totalorder %s19, 0
      %p60 = por %p58, %p59
      %p61 = scmp.ne.s32.totalorder %s53, %s55
      %p62 = scmp.eq.s32.totalorder %s24, 1
      %p63 = por %p61, %p62
      %p64 = scmp.ne.s32.totalorder %s55, %s56
      %p65 = scmp.eq.s32.totalorder %s24, 0
      %p66 = por %p64, %p65
      %p67 = scmp.ne.s32.totalorder %s55, %s56
      %p68 = scmp.eq.s32.totalorder %s25, 1
      %p69 = por %p67, %p68
      %p71 = scmp.ne.s32.totalorder %s56, %s70
      %p72 = scmp.eq.s32.totalorder %s25, 0
      %p73 = por %p71, %p72
      %s75 = sadd.s32 %s74, 1
      %p78 = scmp.eq.s32.totalorder %s19, 1
      %p79 = scmp.ne.s32.totalorder %s74, %s76
      %p80 = scmp.eq.s32.totalorder %s19, 0
      %p81 = por %p79, %p80
      %p82 = scmp.ne.s32.totalorder %s74, %s76
      %p83 = scmp.eq.s32.totalorder %s24, 1
      %p84 = por %p82, %p83
      %p85 = scmp.ne.s32.totalorder %s76, %s77
      %p86 = scmp.eq.s32.totalorder %s24, 0
      %p87 = por %p85, %p86
      %p88 = scmp.ne.s32.totalorder %s76, %s77
      %p89 = scmp.eq.s32.totalorder %s25, 1
      %p90 = por %p88, %p89
      %p92 = scmp.ne.s32.totalorder %s77, %s91
      %p93 = scmp.eq.s32.totalorder %s25, 0
      %p94 = por %p92, %p93
      %s96 = sadd.s32 %s95, 1
      %p99 = scmp.eq.s32.totalorder %s19, 1
      %p100 = scmp.ne.s32.totalorder %s95, %s97
      %p101 = scmp.eq.s32.totalorder %s19, 0
      %p102 = por %p100, %p101
      %p103 = scmp.ne.s32.totalorder %s95, %s97
      %p104 = scmp.eq.s32.totalorder %s24, 1
      %p105 = por %p103, %p104
      %p106 = scmp.ne.s32.totalorder %s97, %s98
      %p107 = scmp.eq.s32.totalorder %s24, 0
      %p108 = por %p106, %p107
      %p109 = scmp.ne.s32.totalorder %s97, %s98
      %p110 = scmp.eq.s32.totalorder %s25, 1
      %p111 = por %p109, %p110
      %p113 = scmp.ne.s32.totalorder %s98, %s112
      %p114 = scmp.eq.s32.totalorder %s25, 0
      %p115 = por %p113, %p114
      %s117 = sadd.s32 %s116, 1
      %p120 = scmp.eq.s32.totalorder %s19, 1
      %p121 = scmp.ne.s32.totalorder %s116, %s118
      %p122 = scmp.eq.s32.totalorder %s19, 0
      %p123 = por %p121, %p122
      %p124 = scmp.ne.s32.totalorder %s116, %s118
      %p125 = scmp.eq.s32.totalorder %s24, 1
      %p126 = por %p124, %p125
      %p127 = scmp.ne.s32.totalorder %s118, %s119
      %p128 = scmp.eq.s32.totalorder %s24, 0
      %p129 = por %p127, %p128
      %p130 = scmp.ne.s32.totalorder %s118, %s119
      %p131 = scmp.eq.s32.totalorder %s25, 1
      %p132 = por %p130, %p131
      %p134 = scmp.ne.s32.totalorder %s119, %s133
      %p135 = scmp.eq.s32.totalorder %s25, 0
      %p136 = por %p134, %p135
      %s138 = sadd.s32 %s137, 1
      %p141 = scmp.eq.s32.totalorder %s19, 1
      %p142 = scmp.ne.s32.totalorder %s137, %s139
      %p143 = scmp.eq.s32.totalorder %s19, 0
      %p144 = por %p142, %p143
      %p145 = scmp.ne.s32.totalorder %s137, %s139
      %p146 = scmp.eq.s32.totalorder %s24, 1
      %p147 = por %p145, %p146
      %p148 = scmp.ne.s32.totalorder %s139, %s140
      %p149 = scmp.eq.s32.totalorder %s24, 0
      %p150 = por %p148, %p149
      %p151 = scmp.ne.s32.totalorder %s139, %s140
      %p152 = scmp.eq.s32.totalorder %s25, 1
      %p153 = por %p151, %p152
      %p155 = scmp.ne.s32.totalorder %s140, %s154
      %p156 = scmp.eq.s32.totalorder %s25, 0
      %p157 = por %p155, %p156
      %s159 = sadd.s32 %s158, 1
      %p162 = scmp.eq.s32.totalorder %s19, 1
      %p163 = scmp.ne.s32.totalorder %s158, %s160
      %p164 = scmp.eq.s32.totalorder %s19, 0
      %p165 = por %p163, %p164
      %p166 = scmp.ne.s32.totalorder %s158, %s160
      %p167 = scmp.eq.s32.totalorder %s24, 1
      %p168 = por %p166, %p167
      %p169 = scmp.ne.s32.totalorder %s160, %s161
      %p170 = scmp.eq.s32.totalorder %s24, 0
      %p171 = por %p169, %p170
      %p172 = scmp.ne.s32.totalorder %s160, %s161
      %p173 = scmp.eq.s32.totalorder %s25, 1
      %p174 = por %p172, %p173
      %p176 = scmp.ne.s32.totalorder %s161, %s175
      %p177 = scmp.eq.s32.totalorder %s25, 0
      %p178 = por %p176, %p177
      %s179 = ssub.s32 %s19, %s26
      %p180 = scmp.eq.s32.totalorder %s179, 0
      %s182 = sadd.s32 %s181, 1
      %s183 = scalar_select %p180, %s181, %s182
      %p186 = pneg %p180
      %p187 = scmp.eq.s32.totalorder %s19, 1
      %p188 = por %p186, %p187
      %p189 = scmp.ne.s32.totalorder %s181, %s184
      %p190 = scmp.eq.s32.totalorder %s19, 0
      %p191 = por %p189, %p190
      %p192 = scmp.ne.s32.totalorder %s181, %s184
      %p193 = scmp.eq.s32.totalorder %s24, 1
      %p194 = por %p192, %p193
      %p195 = scmp.ne.s32.totalorder %s184, %s185
      %p196 = scmp.eq.s32.totalorder %s24, 0
      %p197 = por %p195, %p196
      %p198 = scmp.ne.s32.totalorder %s184, %s185
      %p199 = scmp.eq.s32.totalorder %s25, 1
      %p200 = por %p198, %p199
      %p202 = scmp.ne.s32.totalorder %s185, %s201
      %p203 = scmp.eq.s32.totalorder %s25, 0
      %p204 = por %p202, %p203
      %p205 = scmp.le.s32.totalorder 1, %s19
      %p206 = scmp.lt.s32.totalorder %s19, 3
      %p207 = pnand %p205, %p206
      %p208 = pneg %p207
      // Predicated region
      $region9: #{tpu_custom_call.1} parent=5 // pred_check
        _
      $region10: #{tpu_custom_call.1} parent=5 // pred_check_branch
        %210 = sbr.rel (%p207) target = $region12
      $region11: #{tpu_custom_call.1} parent=5 // pred_region
        %s211 = ssub.s32 %s19, 1
        // Predicated region
        $region13: #{tpu_custom_call.1} parent=11 // pred_check
          %p212 = pneg %p66
        $region14: #{tpu_custom_call.1} parent=11 // pred_check_branch
          %214 = sbr.rel (%p212) target = $region16
        $region15: #{tpu_custom_call.1} parent=11 // pred_region
          _
        $region16: #{tpu_custom_call.1} parent=11 // pred_fallthru
          _
        // Predicated region
        $region17: #{tpu_custom_call.1} parent=11 // pred_check
          %p215 = pneg %p87
        $region18: #{tpu_custom_call.1} parent=11 // pred_check_branch
          %217 = sbr.rel (%p215) target = $region20
        $region19: #{tpu_custom_call.1} parent=11 // pred_region
          _
        $region20: #{tpu_custom_call.1} parent=11 // pred_fallthru
          _
        // Predicated region
        $region21: #{tpu_custom_call.1} parent=11 // pred_check
          %p218 = pneg %p108
        $region22: #{tpu_custom_call.1} parent=11 // pred_check_branch
          %220 = sbr.rel (%p218) target = $region24
        $region23: #{tpu_custom_call.1} parent=11 // pred_region
          _
        $region24: #{tpu_custom_call.1} parent=11 // pred_fallthru
          _
        // Predicated region
        $region25: #{tpu_custom_call.1} parent=11 // pred_check
          %p221 = pneg %p129
        $region26: #{tpu_custom_call.1} parent=11 // pred_check_branch
          %223 = sbr.rel (%p221) target = $region28
        $region27: #{tpu_custom_call.1} parent=11 // pred_region
          _
        $region28: #{tpu_custom_call.1} parent=11 // pred_fallthru
          _
        // Predicated region
        $region29: #{tpu_custom_call.1} parent=11 // pred_check
          %p224 = pneg %p150
        $region30: #{tpu_custom_call.1} parent=11 // pred_check_branch
          %226 = sbr.rel (%p224) target = $region32
        $region31: #{tpu_custom_call.1} parent=11 // pred_region
          _
        $region32: #{tpu_custom_call.1} parent=11 // pred_fallthru
          _
        // Predicated region
        $region33: #{tpu_custom_call.1} parent=11 // pred_check
          %p227 = pneg %p171
        $region34: #{tpu_custom_call.1} parent=11 // pred_check_branch
          %229 = sbr.rel (%p227) target = $region36
        $region35: #{tpu_custom_call.1} parent=11 // pred_region
          _
        $region36: #{tpu_custom_call.1} parent=11 // pred_fallthru
          _
      $region12: #{tpu_custom_call.1} parent=5 // pred_fallthru
        _
      %p230 = scmp.lt.s32.totalorder %s19, 2
      // Predicated region
      $region37: #{tpu_custom_call.1} parent=5 // pred_check
        %p231 = pneg %p230
      $region38: #{tpu_custom_call.1} parent=5 // pred_check_branch
        %233 = sbr.rel (%p231) target = $region40
      $region39: #{tpu_custom_call.1} parent=5 // pred_region
        // Predicated region
        $region41: #{tpu_custom_call.1} parent=39 // pred_check
          %p234 = pneg %p39
        $region42: #{tpu_custom_call.1} parent=39 // pred_check_branch
          %236 = sbr.rel (%p234) target = $region44
        $region43: #{tpu_custom_call.1} parent=39 // pred_region
          %s237 = sand.u32 %s29, 1
          %s238 = scalar_lea.sflag [#allocation3], %s237
          %s239 = sand.u32 %s29, 1
          %s240 = smul.addr %s239, 16
          %s241 = scalar_lea.vmem [#allocation2], %s240
          %243 = vsyncadd %s238, 0
          %s244 = smul.addr %s19, 2
          %s245 = smul.addr %s244, 8
          %s246 = scalar_lea.hbm %s0, %s245
          %s248 = sshll.u32 %s246, 4
          %s249 = int_to_ptr.hbm [resolvable:$true] %s248
          %s250 = sshll.u32 %s241, 4
          %s251 = int_to_ptr.vmem [resolvable:$true] %s250
          %253 = dma.hbm_to_vmem [thread:$0]  %s249, 256, %s251, %s238
        $region44: #{tpu_custom_call.1} parent=39 // pred_fallthru
          _
      $region40: #{tpu_custom_call.1} parent=5 // pred_fallthru
        _
      %p254 = scmp.le.s32.totalorder 1, %s19
      %p255 = scmp.lt.s32.totalorder %s19, 3
      %p256 = pnand %p254, %p255
      %p257 = pneg %p256
      // Predicated region
      $region45: #{tpu_custom_call.1} parent=5 // pred_check
        _
      $region46: #{tpu_custom_call.1} parent=5 // pred_check_branch
        %259 = sbr.rel (%p256) target = $region48
      $region47: #{tpu_custom_call.1} parent=5 // pred_region
        %s260 = ssub.s32 %s19, 1
        %s261 = sand.u32 %s32, 1
        %s262 = scalar_lea.sflag [#allocation3], %s261
        %s263 = sand.u32 %s32, 1
        %s264 = smul.addr %s263, 16
        %s265 = scalar_lea.vmem [#allocation2], %s264
        // Predicated region
        $region49: #{tpu_custom_call.1} parent=47 // pred_check
          %p266 = pneg %p45
        $region50: #{tpu_custom_call.1} parent=47 // pred_check_branch
          %268 = sbr.rel (%p266) target = $region52
        $region51: #{tpu_custom_call.1} parent=47 // pred_region
          %270 = dma.done %s262, 256
        $region52: #{tpu_custom_call.1} parent=47 // pred_fallthru
          _
        %s271 = sand.u32 %s32, 1
        %s272 = scalar_lea.sflag [#allocation3], %s271
        %s273 = sand.u32 %s32, 1
        %s274 = smul.addr %s273, 16
        %s275 = scalar_lea.vmem [#allocation2], %s274
        %p276 = pneg %p45
        %p277 = pneg %p42
        %p278 = pneg %p66
        %p279 = pneg %p63
        %p280 = pneg %p87
        %p281 = pneg %p84
        %p282 = pneg %p108
        %p283 = pneg %p105
        %p284 = pneg %p129
        %p285 = pneg %p126
        %p286 = pneg %p150
        %p287 = pneg %p147
        %p288 = pneg %p171
        %p289 = pneg %p168
        %p290 = pneg %p197
        %p291 = pneg %p194
        %s292 = sand.u32 %s184, 1
        %s293 = scalar_lea.sflag [#allocation4], %s292
        %s294 = sand.u32 %s184, 1
        %s295 = smul.addr %s294, 16
        %s296 = scalar_lea.vmem [#allocation5], %s295
        %v297 = vld [vmem:[%s1] sm:$0xff]
        %v298 = vld [vmem:[%s3] sm:$0xff]
        %v299 = vld [vmem:[%s5] sm:$0xff]
        %v300 = vld [vmem:[%s2] sm:$0xff]
        %v301 = vld [vmem:[%s4] sm:$0xff]
        %v302 = vld [vmem:[%s6] sm:$0xff]
        %v303 = vlaneseq
        %v304 = vand.u32 %v303, 127
        %v305 = vadd.s32 %v304, 128
        %vm306 = vcmp.ge.s32.totalorder %v304, 16
        %vm307 = vcmp.ge.s32.totalorder %v305, 16
        %vm308 = vcmp.lt.s32.totalorder %v304, 256
        %vm309 = vcmp.lt.s32.totalorder %v305, 256
        %vm310 = vmand %vm306, %vm308
        %vm311 = vmand %vm307, %vm309
        %vm312 = vcmp.ge.s32.totalorder %v304, 0
        %vm313 = vcmp.ge.s32.totalorder %v305, 0
        %vm314 = vcmp.lt.s32.totalorder %v304, 240
        %vm315 = vcmp.lt.s32.totalorder %v305, 240
        %vm316 = vmand %vm312, %vm314
        %vm317 = vmand %vm313, %vm315
        %v318 = vld [vmem:[%s265] sm:$0xff]
        %v319 = vld [vmem:[%s265 + $0x8] sm:$0xff]
        %321 = vset.pattern.permute.xlu0 0
        %322 = vperm.xlu0 %321, %v300
        %v323 = vpop.permute.xlu0 %322
        %vm325 = vcmask 64512
        %v327 = vsel %vm325, %v297, 0
        %329 = vmatpush.msra.mxu0 0.0
        %330 = vmatpush.msra.mxu0 0.0
        %331 = vmatpush.msra.mxu0 0.0
        %332 = vmatpush.msra.mxu0 0.0
        %333 = vmatpush.msra.mxu0 0.0
        %334 = vmatpush.msra.mxu0 0.0
        %335 = vmatpush.msra.mxu0 0.0
        %336 = vmatpush.msra.mxu0 0.0
        %337 = vmatpush.msra.mxu0 0.0
        %338 = vmatpush.msra.mxu0 0.0
        %339 = vmatpush.msra.mxu0 0.0
        %340 = vmatpush.msra.mxu0 0.0
        %341 = vmatpush.msra.mxu0 0.0
        %342 = vmatpush.msra.mxu0 0.0
        %343 = vmatpush.msra.mxu0 0.0
        %344 = vmatpush.msra.mxu0 %v318
        %345 = vmatmul.f32.gmra.mxu0 %v327
        %v346 = vpop.f32.mrf.mxu0
        %v347 = vadd.f32 %v323, %v346
        %348 = vdwg.mxu0
        %349 = vmatpush.msra.mxu0 0.0
        %350 = vmatpush.msra.mxu0 0.0
        %351 = vmatpush.msra.mxu0 0.0
        %352 = vmatpush.msra.mxu0 0.0
        %353 = vmatpush.msra.mxu0 0.0
        %354 = vmatpush.msra.mxu0 0.0
        %355 = vmatpush.msra.mxu0 0.0
        %356 = vmatpush.msra.mxu0 0.0
        %357 = vmatpush.msra.mxu0 0.0
        %358 = vmatpush.msra.mxu0 0.0
        %359 = vmatpush.msra.mxu0 0.0
        %360 = vmatpush.msra.mxu0 0.0
        %361 = vmatpush.msra.mxu0 0.0
        %362 = vmatpush.msra.mxu0 0.0
        %363 = vmatpush.msra.mxu0 0.0
        %364 = vmatpush.msra.mxu0 %v319
        %365 = vmatmul.f32.gmra.mxu0 %v327
        %v366 = vpop.f32.mrf.mxu0
        %v367 = vadd.f32 %v323, %v366
        %368 = vdwg.mxu0
        %v369 = vmax.f32 %v347, 0.0
        %v370 = vmax.f32 %v367, 0.0
        %371 = vrot.lane.b32.xlu0 %v369, 16
        %v372 = vpop.permute.xlu0 %371
        %373 = vrot.lane.b32.xlu0 %v370, 16
        %v374 = vpop.permute.xlu0 %373
        %vm375 = vcmp.lt.s32.totalorder %v304, 16
        %v376 = vsel %vm375, %v372, %v374
        %v377 = vsel %vm375, %v374, %v372
        %v378 = vsel %vm310, %v377, 0.0
        %v379 = vsel %vm311, %v376, 0.0
        %380 = vrot.lane.b32.xlu0 %v369, 112
        %v381 = vpop.permute.xlu0 %380
        %382 = vrot.lane.b32.xlu0 %v370, 112
        %v383 = vpop.permute.xlu0 %382
        %vm384 = vcmp.lt.s32.totalorder %v304, 112
        %v385 = vsel %vm384, %v381, %v383
        %v386 = vsel %vm384, %v383, %v381
        %v387 = vsel %vm316, %v385, 0.0
        %v388 = vsel %vm317, %v386, 0.0
        %390 = vset.pattern.permute.xlu0 0
        %391 = vperm.xlu0 %390, %v301
        %v392 = vpop.permute.xlu0 %391
        %vm394 = vcmask 195584
        %v396 = vsel %vm394, %v298, 0
        %398 = vmatpush.msra.mxu0 0.0
        %399 = vmatpush.msra.mxu0 0.0
        %400 = vmatpush.msra.mxu0 0.0
        %401 = vmatpush.msra.mxu0 0.0
        %402 = vmatpush.msra.mxu0 0.0
        %403 = vmatpush.msra.mxu0 0.0
        %404 = vmatpush.msra.mxu0 0.0
        %405 = vmatpush.msra.mxu0 0.0
        %406 = vmatpush.msra.mxu0 0.0
        %407 = vmatpush.msra.mxu0 0.0
        %408 = vmatpush.msra.mxu0 0.0
        %409 = vmatpush.msra.mxu0 0.0
        %410 = vmatpush.msra.mxu0 0.0
        %411 = vmatpush.msra.mxu0 %v387
        %412 = vmatpush.msra.mxu0 %v369
        %413 = vmatpush.msra.mxu0 %v378
        %414 = vmatmul.f32.gmra.mxu0 %v396
        %v415 = vpop.f32.mrf.mxu0
        %v416 = vadd.f32 %v392, %v415
        %417 = vdwg.mxu0
        %418 = vmatpush.msra.mxu0 0.0
        %419 = vmatpush.msra.mxu0 0.0
        %420 = vmatpush.msra.mxu0 0.0
        %421 = vmatpush.msra.mxu0 0.0
        %422 = vmatpush.msra.mxu0 0.0
        %423 = vmatpush.msra.mxu0 0.0
        %424 = vmatpush.msra.mxu0 0.0
        %425 = vmatpush.msra.mxu0 0.0
        %426 = vmatpush.msra.mxu0 0.0
        %427 = vmatpush.msra.mxu0 0.0
        %428 = vmatpush.msra.mxu0 0.0
        %429 = vmatpush.msra.mxu0 0.0
        %430 = vmatpush.msra.mxu0 0.0
        %431 = vmatpush.msra.mxu0 %v388
        %432 = vmatpush.msra.mxu0 %v370
        %433 = vmatpush.msra.mxu0 %v379
        %434 = vmatmul.f32.gmra.mxu0 %v396
        %v435 = vpop.f32.mrf.mxu0
        %v436 = vadd.f32 %v392, %v435
        %437 = vdwg.mxu0
        %v438 = vmax.f32 %v416, 0.0
        %v439 = vmax.f32 %v436, 0.0
        %441 = vset.pattern.permute.xlu0 0
        %442 = vperm.xlu0 %441, %v302
        %v443 = vpop.permute.xlu0 %442
        %v446 = vsel %vm325, %v299, 0
        %448 = vmatpush.msra.mxu0 0.0
        %449 = vmatpush.msra.mxu0 0.0
        %450 = vmatpush.msra.mxu0 0.0
        %451 = vmatpush.msra.mxu0 0.0
        %452 = vmatpush.msra.mxu0 0.0
        %453 = vmatpush.msra.mxu0 0.0
        %454 = vmatpush.msra.mxu0 0.0
        %455 = vmatpush.msra.mxu0 0.0
        %456 = vmatpush.msra.mxu0 0.0
        %457 = vmatpush.msra.mxu0 0.0
        %458 = vmatpush.msra.mxu0 0.0
        %459 = vmatpush.msra.mxu0 0.0
        %460 = vmatpush.msra.mxu0 0.0
        %461 = vmatpush.msra.mxu0 0.0
        %462 = vmatpush.msra.mxu0 0.0
        %463 = vmatpush.msra.mxu0 %v438
        %464 = vmatmul.f32.gmra.mxu0 %v446
        %v465 = vpop.f32.mrf.mxu0
        %v466 = vadd.f32 %v443, %v465
        %467 = vdwg.mxu0
        %468 = vmatpush.msra.mxu0 0.0
        %469 = vmatpush.msra.mxu0 0.0
        %470 = vmatpush.msra.mxu0 0.0
        %471 = vmatpush.msra.mxu0 0.0
        %472 = vmatpush.msra.mxu0 0.0
        %473 = vmatpush.msra.mxu0 0.0
        %474 = vmatpush.msra.mxu0 0.0
        %475 = vmatpush.msra.mxu0 0.0
        %476 = vmatpush.msra.mxu0 0.0
        %477 = vmatpush.msra.mxu0 0.0
        %478 = vmatpush.msra.mxu0 0.0
        %479 = vmatpush.msra.mxu0 0.0
        %480 = vmatpush.msra.mxu0 0.0
        %481 = vmatpush.msra.mxu0 0.0
        %482 = vmatpush.msra.mxu0 0.0
        %483 = vmatpush.msra.mxu0 %v439
        %484 = vmatmul.f32.gmra.mxu0 %v446
        %v485 = vpop.f32.mrf.mxu0
        %v486 = vadd.f32 %v443, %v485
        %487 = vdwg.mxu0
        %v488 = vadd.f32 %v466, %v318
        %v489 = vadd.f32 %v486, %v319
        %v490 = vmax.f32 %v488, 0.0
        %v491 = vmax.f32 %v489, 0.0
        %492 = vst [vmem:[%s296] sm:$0xff] %v490
        %493 = vst [vmem:[%s296 + $0x8] sm:$0xff] %v491
        %s494 = sand.u32 %s184, 1
        %s495 = scalar_lea.sflag [#allocation4], %s494
        %s496 = sand.u32 %s184, 1
        %s497 = smul.addr %s496, 16
        %s498 = scalar_lea.vmem [#allocation5], %s497
        // Predicated region
        $region53: #{tpu_custom_call.1} parent=47 // pred_check
          %p499 = pneg %p194
        $region54: #{tpu_custom_call.1} parent=47 // pred_check_branch
          %501 = sbr.rel (%p499) target = $region56
        $region55: #{tpu_custom_call.1} parent=47 // pred_region
          %503 = vsyncadd %s495, 0
          %s504 = smul.addr %s24, 2
          %s505 = smul.addr %s504, 8
          %s506 = scalar_lea.hbm %s7, %s505
          %s508 = sshll.u32 %s498, 4
          %s509 = int_to_ptr.vmem [resolvable:$true] %s508
          %s510 = sshll.u32 %s506, 4
          %s511 = int_to_ptr.hbm [resolvable:$true] %s510
          %513 = dma.vmem_to_hbm [thread:$0]  %s509, 256, %s511, %s495
        $region56: #{tpu_custom_call.1} parent=47 // pred_fallthru
          _
      $region48: #{tpu_custom_call.1} parent=5 // pred_fallthru
        _
      %p514 = scmp.le.s32.totalorder 2, %s19
      // Predicated region
      $region57: #{tpu_custom_call.1} parent=5 // pred_check
        %p515 = pneg %p514
      $region58: #{tpu_custom_call.1} parent=5 // pred_check_branch
        %517 = sbr.rel (%p515) target = $region60
      $region59: #{tpu_custom_call.1} parent=5 // pred_region
        %s518 = ssub.s32 %s19, 2
        // Predicated region
        $region61: #{tpu_custom_call.1} parent=59 // pred_check
          %p519 = pneg %p200
        $region62: #{tpu_custom_call.1} parent=59 // pred_check_branch
          %521 = sbr.rel (%p519) target = $region64
        $region63: #{tpu_custom_call.1} parent=59 // pred_region
          %s522 = sand.u32 %s185, 1
          %s523 = scalar_lea.sflag [#allocation4], %s522
          %s524 = sand.u32 %s185, 1
          %s525 = smul.addr %s524, 16
          %s526 = scalar_lea.vmem [#allocation5], %s525
          %528 = dma.done %s523, 256
        $region64: #{tpu_custom_call.1} parent=59 // pred_fallthru
          _
      $region60: #{tpu_custom_call.1} parent=5 // pred_fallthru
        _
    $region6: #{tpu_custom_call.1} parent=1 // loop_footer
      %s23 = sadd.s32 1, %s19
    $region7: #{tpu_custom_call.1} parent=1 // loop_footer_branch
      %18 = sbr.rel target = $region3
    $region8: #{tpu_custom_call.1} parent=1 // loop_exit
      _
    %529 = vsyncpa [#allocation3], 1
    %s530 = scalar_lea.sflag [#allocation3], 1
    %531 = vsyncpa %s530, 1
    %532 = vsyncpa [#allocation4], 1
    %s533 = scalar_lea.sflag [#allocation4], 1
    %534 = vsyncpa %s533, 1

</llo_original>
